<compile_context>
chip_gen: v5e
topology: v5e:2x2
jax: 0.10.0
libtpu: 0.0.40
codegen_flags: <defaults>
</compile_context>

<pallas_src>
import math

import jax
import jax.numpy as jnp
import numpy as np
from jax import lax
from jax.experimental import pallas as pl
from jax.experimental.pallas import tpu as pltpu

# ---------------- configuration (small, deterministic) ----------------
BATCH = 2
SEQ = 8
HIDDEN = 32
NUM_Q_HEADS = 4
NUM_KV_HEADS = 2
HEAD_DIM = 8
GROUP_SIZE = NUM_Q_HEADS // NUM_KV_HEADS
SCALE = 1.0 / math.sqrt(HEAD_DIM)


# ---------------- Pallas kernel: per-(batch, kv_head group) attention ----------------
def gqa_group_kernel(q_ref, k_ref, v_ref, o_ref):
    # q_ref: (1, 1, GROUP_SIZE*S, D)  all query heads of this group, rows stacked
    # k_ref / v_ref: (1, 1, S, D)     the single shared KV head for this group
    # o_ref: (1, 1, GROUP_SIZE*S, D)
    q = q_ref[0, 0]  # [G*S, D]  (scale already folded into Wq in the wrapper)
    k = k_ref[0, 0]  # [S, D]
    v = v_ref[0, 0]  # [S, D]

    # scores = Q K^T  -> [G*S, S]; contract last dims directly (no K transpose),
    # accumulate in f32 on the MXU.
    scores = lax.dot_general(
        q, k, (((1,), (1,)), ((), ())), preferred_element_type=jnp.float32
    )

    # numerically stable softmax over the key axis (kept in f32)
    m = jnp.max(scores, axis=-1, keepdims=True)
    p = jnp.exp(scores - m)
    denom = jnp.sum(p, axis=-1, keepdims=True)

    # context = P @ V  -> [G*S, D], then normalize with an EUP reciprocal + multiply
    ctx = lax.dot_general(
        p.astype(v.dtype), v, (((1,), (0,)), ((), ())),
        preferred_element_type=jnp.float32,
    )
    ctx = ctx * pl.reciprocal(denom, approx=True)
    o_ref[0, 0] = ctx.astype(o_ref.dtype)


def gqa_attention(q, k, v):
    """q: [B, NKV, GROUP_SIZE*S, D]; k, v: [B, NKV, S, D] -> [B, NKV, GROUP_SIZE*S, D]."""
    B, NKV, GS, D = q.shape
    S = k.shape[2]

    return pl.pallas_call(
        gqa_group_kernel,
        out_shape=jax.ShapeDtypeStruct((B, NKV, GS, D), jnp.float32),
        grid_spec=pltpu.PrefetchScalarGridSpec(
            num_scalar_prefetch=0,
            grid=(B, NKV),
            in_specs=[
                pl.BlockSpec((1, 1, GS, D), lambda b, g: (b, g, 0, 0)),
                pl.BlockSpec((1, 1, S, D), lambda b, g: (b, g, 0, 0)),
                pl.BlockSpec((1, 1, S, D), lambda b, g: (b, g, 0, 0)),
            ],
            out_specs=pl.BlockSpec((1, 1, GS, D), lambda b, g: (b, g, 0, 0)),
        ),
        compiler_params=pltpu.CompilerParams(
            dimension_semantics=("parallel", "parallel"),
            vmem_limit_bytes=64 * 1024 * 1024,
        ),
    )(q, k, v)


# ---------------- full GQA forward (projections are JAX glue) ----------------
def gqa_forward(x, wq, wk, wv, wo):
    B, S, H = x.shape
    # projections; 1/sqrt(head_dim) baked into Wq so the kernel never scales scores
    q = (x @ (wq * SCALE)).reshape(B, S, NUM_Q_HEADS, HEAD_DIM)
    k = (x @ wk).reshape(B, S, NUM_KV_HEADS, HEAD_DIM)
    v = (x @ wv).reshape(B, S, NUM_KV_HEADS, HEAD_DIM)

    # arrange Q as [B, NKV, GROUP_SIZE*S, D]: heads of one group stacked along rows
    q = q.transpose(0, 2, 1, 3)                                    # [B, NQ, S, D]
    q = q.reshape(B, NUM_KV_HEADS, GROUP_SIZE * S, HEAD_DIM)       # group-major rows
    k = k.transpose(0, 2, 1, 3)                                    # [B, NKV, S, D]
    v = v.transpose(0, 2, 1, 3)

    ctx = gqa_attention(q, k, v)                                   # [B, NKV, G*S, D]

    # back to [B, S, NQ*D] (head-major) and apply output projection
    ctx = ctx.reshape(B, NUM_Q_HEADS, S, HEAD_DIM).transpose(0, 2, 1, 3)
    ctx = ctx.reshape(B, S, NUM_Q_HEADS * HEAD_DIM)
    return ctx @ wo


# ---------------- pure-JAX reference for correctness ----------------
def gqa_reference(x, wq, wk, wv, wo):
    B, S, H = x.shape
    q = (x @ wq).reshape(B, S, NUM_Q_HEADS, HEAD_DIM).transpose(0, 2, 1, 3)
    k = (x @ wk).reshape(B, S, NUM_KV_HEADS, HEAD_DIM).transpose(0, 2, 1, 3)
    v = (x @ wv).reshape(B, S, NUM_KV_HEADS, HEAD_DIM).transpose(0, 2, 1, 3)
    # expand kv heads to match query heads (each group shares a kv head)
    k = jnp.repeat(k, GROUP_SIZE, axis=1)
    v = jnp.repeat(v, GROUP_SIZE, axis=1)
    scores = jnp.einsum("bhqd,bhkd->bhqk", q, k) * SCALE
    attn = jax.nn.softmax(scores, axis=-1)
    ctx = jnp.einsum("bhqk,bhkd->bhqd", attn, v)
    ctx = ctx.transpose(0, 2, 1, 3).reshape(B, S, NUM_Q_HEADS * HEAD_DIM)
    return ctx @ wo


if __name__ == "__main__":
    key = jax.random.PRNGKey(0)
    kx, kq, kk, kv, ko = jax.random.split(key, 5)

    # deterministic synthetic parameters (nn.Linear-like shapes, no bias)
    x = jax.random.normal(kx, (BATCH, SEQ, HIDDEN), dtype=jnp.float32)
    wq = jax.random.normal(kq, (HIDDEN, NUM_Q_HEADS * HEAD_DIM), dtype=jnp.float32) * 0.1
    wk = jax.random.normal(kk, (HIDDEN, NUM_KV_HEADS * HEAD_DIM), dtype=jnp.float32) * 0.1
    wv = jax.random.normal(kv, (HIDDEN, NUM_KV_HEADS * HEAD_DIM), dtype=jnp.float32) * 0.1
    wo = jax.random.normal(ko, (NUM_Q_HEADS * HEAD_DIM, HIDDEN), dtype=jnp.float32) * 0.1

    out = jax.block_until_ready(gqa_forward(x, wq, wk, wv, wo))
    ref = jax.block_until_ready(gqa_reference(x, wq, wk, wv, wo))

    assert out.shape == (BATCH, SEQ, HIDDEN)
    # slightly loose tolerance: pl.reciprocal(approx=True) uses the EUP approximate
    # reciprocal rather than a full-precision divide
    np.testing.assert_allclose(np.asarray(out), np.asarray(ref), rtol=5e-3, atol=5e-3)

    print("KERNEL_OK")
</pallas_src>

<mosaic_0001>
module attributes {stable_mosaic.version = 11 : i64} {
  func.func @gqa_group_kernel(%arg0: i32, %arg1: i32, %arg2: memref<1x1x16x8xf32, #tpu.memory_space<vmem>>, %arg3: memref<1x1x8x8xf32, #tpu.memory_space<vmem>>, %arg4: memref<1x1x8x8xf32, #tpu.memory_space<vmem>>, %arg5: memref<1x1x16x8xf32, #tpu.memory_space<vmem>>) attributes {dimension_semantics = [#tpu.dimension_semantics<parallel>, #tpu.dimension_semantics<parallel>], iteration_bounds = array<i64: 2, 2>, scalar_prefetch = 0 : i64, scratch_operands = 0 : i64, tpu.core_type = #tpu.core_type<tc>, window_params = [{transform_indices = @transform_0, window_bounds = array<i64: 1, 1, 16, 8>}, {transform_indices = @transform_1, window_bounds = array<i64: 1, 1, 8, 8>}, {transform_indices = @transform_2, window_bounds = array<i64: 1, 1, 8, 8>}, {transform_indices = @transform_3, window_bounds = array<i64: 1, 1, 16, 8>}]} {
    %c0 = arith.constant 0 : index
    %c0_0 = arith.constant 0 : index
    %c0_1 = arith.constant 0 : index
    %c0_2 = arith.constant 0 : index
    %0 = vector.load %arg2[%c0, %c0_0, %c0_1, %c0_2] : memref<1x1x16x8xf32, #tpu.memory_space<vmem>>, vector<1x1x16x8xf32>
    %1 = vector.shape_cast %0 : vector<1x1x16x8xf32> to vector<16x8xf32>
    %c0_3 = arith.constant 0 : index
    %c0_4 = arith.constant 0 : index
    %c0_5 = arith.constant 0 : index
    %c0_6 = arith.constant 0 : index
    %2 = vector.load %arg3[%c0_3, %c0_4, %c0_5, %c0_6] : memref<1x1x8x8xf32, #tpu.memory_space<vmem>>, vector<1x1x8x8xf32>
    %3 = vector.shape_cast %2 : vector<1x1x8x8xf32> to vector<8x8xf32>
    %c0_7 = arith.constant 0 : index
    %c0_8 = arith.constant 0 : index
    %c0_9 = arith.constant 0 : index
    %c0_10 = arith.constant 0 : index
    %4 = vector.load %arg4[%c0_7, %c0_8, %c0_9, %c0_10] : memref<1x1x8x8xf32, #tpu.memory_space<vmem>>, vector<1x1x8x8xf32>
    %5 = vector.shape_cast %4 : vector<1x1x8x8xf32> to vector<8x8xf32>
    %cst = arith.constant dense<0.000000e+00> : vector<16x8xf32>
    %6 = tpu.matmul %1, %3, %cst {dimension_numbers = #tpu.dot_dimension_numbers<[1], [1], [0], [0], [0, 0, 1, 0], [], []>} : vector<16x8xf32>, vector<8x8xf32>, vector<16x8xf32> -> vector<16x8xf32>
    %cst_11 = arith.constant dense<0xFF800000> : vector<16xf32>
    %7 = vector.multi_reduction <maximumf>, %6, %cst_11 [1] : vector<16x8xf32> to vector<16xf32>
    %8 = vector.shape_cast %7 : vector<16xf32> to vector<16x1xf32>
    %9 = vector.broadcast %8 : vector<16x1xf32> to vector<16x8xf32>
    %10 = arith.subf %6, %9 : vector<16x8xf32>
    %11 = math.exp %10 : vector<16x8xf32>
    %cst_12 = arith.constant dense<0.000000e+00> : vector<16xf32>
    %12 = vector.multi_reduction <add>, %11, %cst_12 [1] : vector<16x8xf32> to vector<16xf32>
    %13 = vector.shape_cast %12 : vector<16xf32> to vector<16x1xf32>
    %cst_13 = arith.constant dense<0.000000e+00> : vector<16x8xf32>
    %14 = tpu.matmul %11, %5, %cst_13 {dimension_numbers = #tpu.dot_dimension_numbers<[1], [0], [0], [1], [0, 0, 1, 1], [], []>} : vector<16x8xf32>, vector<8x8xf32>, vector<16x8xf32> -> vector<16x8xf32>
    %15 = tpu.reciprocal %13 {approx = true} : vector<16x1xf32> -> vector<16x1xf32>
    %16 = vector.broadcast %15 : vector<16x1xf32> to vector<16x8xf32>
    %17 = arith.mulf %14, %16 : vector<16x8xf32>
    %c0_14 = arith.constant 0 : index
    %c0_15 = arith.constant 0 : index
    %c0_16 = arith.constant 0 : index
    %c0_17 = arith.constant 0 : index
    %18 = vector.load %arg5[%c0_14, %c0_15, %c0_16, %c0_17] : memref<1x1x16x8xf32, #tpu.memory_space<vmem>>, vector<1x1x16x8xf32>
    %19 = vector.shape_cast %18 : vector<1x1x16x8xf32> to vector<16x8xf32>
    %20 = vector.shape_cast %17 : vector<16x8xf32> to vector<1x1x16x8xf32>
    tpu.vector_store %arg5[%c0_14, %c0_15, %c0_16, %c0_17], %20 {strides = array<i32>} : memref<1x1x16x8xf32, #tpu.memory_space<vmem>>, vector<1x1x16x8xf32>,
    return
  }
  func.func @transform_0(%arg0: i32, %arg1: i32) -> (i32, i32, i32, i32) {
    %c0_i32 = arith.constant 0 : i32
    %c0_i32_0 = arith.constant 0 : i32
    %c0_i32_1 = arith.constant 0 : i32
    return %arg0, %arg1, %c0_i32, %c0_i32_0 : i32, i32, i32, i32
  }
  func.func @transform_1(%arg0: i32, %arg1: i32) -> (i32, i32, i32, i32) {
    %c0_i32 = arith.constant 0 : i32
    %c0_i32_0 = arith.constant 0 : i32
    %c0_i32_1 = arith.constant 0 : i32
    return %arg0, %arg1, %c0_i32, %c0_i32_0 : i32, i32, i32, i32
  }
  func.func @transform_2(%arg0: i32, %arg1: i32) -> (i32, i32, i32, i32) {
    %c0_i32 = arith.constant 0 : i32
    %c0_i32_0 = arith.constant 0 : i32
    %c0_i32_1 = arith.constant 0 : i32
    return %arg0, %arg1, %c0_i32, %c0_i32_0 : i32, i32, i32, i32
  }
  func.func @transform_3(%arg0: i32, %arg1: i32) -> (i32, i32, i32, i32) {
    %c0_i32 = arith.constant 0 : i32
    %c0_i32_0 = arith.constant 0 : i32
    %c0_i32_1 = arith.constant 0 : i32
    return %arg0, %arg1, %c0_i32, %c0_i32_0 : i32, i32, i32, i32
  }
}

</mosaic_0001>

<llo_original>
// kernel: tpu_custom_call.1
$region0: #{tpu_custom_call.1}
  #allocation0 [shape = 'u32[]', space=smem, size = 0x4, offset = 0x4, fixed_abs, tag = 'smem constant byte address 0x4 - core index']
  #allocation1 [shape = 'u32[72,128]{1,0:T(1,128)}', space=vmem, size = 0x9000, scoped, tag = 'internal scratch']
  %s0 = inlined_call_operand.vmem [shape: f32[2,2,16,8], index: 0, kind: input, shape index: {}]
  %s1 = inlined_call_operand.vmem [shape: f32[2,2,8,8], index: 1, kind: input, shape index: {}]
  %s2 = inlined_call_operand.vmem [shape: f32[2,2,8,8], index: 2, kind: input, shape index: {}]
  %s3 = inlined_call_operand.vmem [shape: f32[2,2,16,8], index: 3, kind: output, shape index: {}]
  %s4 = sld [smem:[#allocation0]]
  $region45: #{tpu_custom_call.1} parent=0
    _
  %s6 = ssub.s32 1, %s4
  %s7 = scalar_select 0, %s6, %s4
  loop: start=0, step=1, limit=6
  $region2: #{tpu_custom_call.1} parent=0 // loop_pre_header
    _
  $region3: #{tpu_custom_call.1} parent=0 // loop_header
    %s9 = sphi 0, %s13
    %p10 = scmp.ge.s32.totalorder %s9, 6
    %s16 = sphi 0, %s28
    %s17 = sphi 0, %s24
    %s18 = sphi 0, %s16
    %s19 = sphi 0, %s17
    %s20 = sphi 0, %s18
    %s21 = sphi 0, %s19
    %s33 = sphi 0, %s35
    %s36 = sphi 0, %s33
    %s37 = sphi 0, %s36
    %s53 = sphi 0, %s37
    %s61 = sphi 0, %s63
    %s64 = sphi 0, %s61
    %s65 = sphi 0, %s64
    %s81 = sphi 0, %s65
    %s89 = sphi 0, %s91
    %s92 = sphi 0, %s89
    %s93 = sphi 0, %s92
    %s109 = sphi 0, %s93
    %s117 = sphi 0, %s119
    %s120 = sphi 0, %s117
    %s121 = sphi 0, %s120
    %s137 = sphi 0, %s121
  $region4: #{tpu_custom_call.1} parent=0 // loop_header_branch
    %12 = sbr.rel (%p10) target = $region8
  $region5: #{tpu_custom_call.1} parent=0 // loop_body
    %s14 = ssub.s32 %s9, 1
    %s15 = ssub.s32 %s9, 2
    %s22 = sadd.s32 1, %s17
    %p23 = scmp.ge.s32.totalorder %s22, 2
    %s24 = scalar_select %p23, 0, %s22
    %s25 = sadd.s32 1, %s16
    %s26 = scalar_select %p23, %s25, %s16
    %p27 = scmp.ge.s32.totalorder %s26, 2
    %s28 = scalar_select %p27, 0, %s26
    %s29 = ssub.s32 %s16, %s28
    %s30 = ssub.s32 %s17, %s24
    %s31 = sor.u32 %s29, %s30
    %p32 = scmp.eq.s32.totalorder %s31, 0
    %s34 = sadd.s32 %s33, 1
    %s35 = scalar_select %p32, %s33, %s34
    %p38 = pneg %p32
    %p39 = scmp.eq.s32.totalorder %s9, 3
    %p40 = por %p38, %p39
    %p41 = scmp.ne.s32.totalorder %s33, %s36
    %p42 = scmp.eq.s32.totalorder %s9, 0
    %p43 = por %p41, %p42
    %p44 = scmp.ne.s32.totalorder %s33, %s36
    %p45 = scmp.eq.s32.totalorder %s14, 3
    %p46 = por %p44, %p45
    %p47 = scmp.ne.s32.totalorder %s36, %s37
    %p48 = scmp.eq.s32.totalorder %s14, 0
    %p49 = por %p47, %p48
    %p50 = scmp.ne.s32.totalorder %s36, %s37
    %p51 = scmp.eq.s32.totalorder %s15, 3
    %p52 = por %p50, %p51
    %p54 = scmp.ne.s32.totalorder %s37, %s53
    %p55 = scmp.eq.s32.totalorder %s15, 0
    %p56 = por %p54, %p55
    %s57 = ssub.s32 %s16, %s28
    %s58 = ssub.s32 %s17, %s24
    %s59 = sor.u32 %s57, %s58
    %p60 = scmp.eq.s32.totalorder %s59, 0
    %s62 = sadd.s32 %s61, 1
    %s63 = scalar_select %p60, %s61, %s62
    %p66 = pneg %p60
    %p67 = scmp.eq.s32.totalorder %s9, 3
    %p68 = por %p66, %p67
    %p69 = scmp.ne.s32.totalorder %s61, %s64
    %p70 = scmp.eq.s32.totalorder %s9, 0
    %p71 = por %p69, %p70
    %p72 = scmp.ne.s32.totalorder %s61, %s64
    %p73 = scmp.eq.s32.totalorder %s14, 3
    %p74 = por %p72, %p73
    %p75 = scmp.ne.s32.totalorder %s64, %s65
    %p76 = scmp.eq.s32.totalorder %s14, 0
    %p77 = por %p75, %p76
    %p78 = scmp.ne.s32.totalorder %s64, %s65
    %p79 = scmp.eq.s32.totalorder %s15, 3
    %p80 = por %p78, %p79
    %p82 = scmp.ne.s32.totalorder %s65, %s81
    %p83 = scmp.eq.s32.totalorder %s15, 0
    %p84 = por %p82, %p83
    %s85 = ssub.s32 %s16, %s28
    %s86 = ssub.s32 %s17, %s24
    %s87 = sor.u32 %s85, %s86
    %p88 = scmp.eq.s32.totalorder %s87, 0
    %s90 = sadd.s32 %s89, 1
    %s91 = scalar_select %p88, %s89, %s90
    %p94 = pneg %p88
    %p95 = scmp.eq.s32.totalorder %s9, 3
    %p96 = por %p94, %p95
    %p97 = scmp.ne.s32.totalorder %s89, %s92
    %p98 = scmp.eq.s32.totalorder %s9, 0
    %p99 = por %p97, %p98
    %p100 = scmp.ne.s32.totalorder %s89, %s92
    %p101 = scmp.eq.s32.totalorder %s14, 3
    %p102 = por %p100, %p101
    %p103 = scmp.ne.s32.totalorder %s92, %s93
    %p104 = scmp.eq.s32.totalorder %s14, 0
    %p105 = por %p103, %p104
    %p106 = scmp.ne.s32.totalorder %s92, %s93
    %p107 = scmp.eq.s32.totalorder %s15, 3
    %p108 = por %p106, %p107
    %p110 = scmp.ne.s32.totalorder %s93, %s109
    %p111 = scmp.eq.s32.totalorder %s15, 0
    %p112 = por %p110, %p111
    %s113 = ssub.s32 %s16, %s28
    %s114 = ssub.s32 %s17, %s24
    %s115 = sor.u32 %s113, %s114
    %p116 = scmp.eq.s32.totalorder %s115, 0
    %s118 = sadd.s32 %s117, 1
    %s119 = scalar_select %p116, %s117, %s118
    %p122 = pneg %p116
    %p123 = scmp.eq.s32.totalorder %s9, 3
    %p124 = por %p122, %p123
    %p125 = scmp.ne.s32.totalorder %s117, %s120
    %p126 = scmp.eq.s32.totalorder %s9, 0
    %p127 = por %p125, %p126
    %p128 = scmp.ne.s32.totalorder %s117, %s120
    %p129 = scmp.eq.s32.totalorder %s14, 3
    %p130 = por %p128, %p129
    %p131 = scmp.ne.s32.totalorder %s120, %s121
    %p132 = scmp.eq.s32.totalorder %s14, 0
    %p133 = por %p131, %p132
    %p134 = scmp.ne.s32.totalorder %s120, %s121
    %p135 = scmp.eq.s32.totalorder %s15, 3
    %p136 = por %p134, %p135
    %p138 = scmp.ne.s32.totalorder %s121, %s137
    %p139 = scmp.eq.s32.totalorder %s15, 0
    %p140 = por %p138, %p139
    %p141 = scmp.le.s32.totalorder 1, %s9
    %p142 = scmp.lt.s32.totalorder %s9, 5
    %p143 = pnand %p141, %p142
    %p144 = pneg %p143
    // Predicated region
    $region9: #{tpu_custom_call.1} parent=5 // pred_check
      _
    $region10: #{tpu_custom_call.1} parent=5 // pred_check_branch
      %146 = sbr.rel (%p143) target = $region12
    $region11: #{tpu_custom_call.1} parent=5 // pred_region
      %s147 = ssub.s32 %s9, 1
    $region12: #{tpu_custom_call.1} parent=5 // pred_fallthru
      _
    %p148 = scmp.lt.s32.totalorder %s9, 4
    // Predicated region
    $region13: #{tpu_custom_call.1} parent=5 // pred_check
      %p149 = pneg %p148
    $region14: #{tpu_custom_call.1} parent=5 // pred_check_branch
      %151 = sbr.rel (%p149) target = $region16
    $region15: #{tpu_custom_call.1} parent=5 // pred_region
      // Predicated region
      $region17: #{tpu_custom_call.1} parent=15 // pred_check
        %p152 = pneg %p43
      $region18: #{tpu_custom_call.1} parent=15 // pred_check_branch
        %154 = sbr.rel (%p152) target = $region20
      $region19: #{tpu_custom_call.1} parent=15 // pred_region
        %p155 = scmp.lt.s32.totalorder %s16, 1
        %s156 = scalar_select %p155, %s16, 1
        %p157 = scmp.lt.s32.totalorder %s17, 1
        %s158 = scalar_select %p157, %s17, 1
        %s159 = smul.addr %s158, 2
        %s160 = smul.addr %s156, 4
        %s161 = sadd.s32 %s159, %s160
        %s162 = smul.addr %s161, 8
        %s163 = scalar_lea.vmem %s0, %s162
      $region20: #{tpu_custom_call.1} parent=15 // pred_fallthru
        _
      // Predicated region
      $region21: #{tpu_custom_call.1} parent=15 // pred_check
        %p164 = pneg %p71
      $region22: #{tpu_custom_call.1} parent=15 // pred_check_branch
        %166 = sbr.rel (%p164) target = $region24
      $region23: #{tpu_custom_call.1} parent=15 // pred_region
        %p167 = scmp.lt.s32.totalorder %s16, 1
        %s168 = scalar_select %p167, %s16, 1
        %p169 = scmp.lt.s32.totalorder %s17, 1
        %s170 = scalar_select %p169, %s17, 1
        %s171 = smul.addr %s168, 2
        %s172 = sadd.s32 %s170, %s171
        %s173 = smul.addr %s172, 8
        %s174 = scalar_lea.vmem %s1, %s173
      $region24: #{tpu_custom_call.1} parent=15 // pred_fallthru
        _
      // Predicated region
      $region25: #{tpu_custom_call.1} parent=15 // pred_check
        %p175 = pneg %p99
      $region26: #{tpu_custom_call.1} parent=15 // pred_check_branch
        %177 = sbr.rel (%p175) target = $region28
      $region27: #{tpu_custom_call.1} parent=15 // pred_region
        %p178 = scmp.lt.s32.totalorder %s16, 1
        %s179 = scalar_select %p178, %s16, 1
        %p180 = scmp.lt.s32.totalorder %s17, 1
        %s181 = scalar_select %p180, %s17, 1
        %s182 = smul.addr %s179, 2
        %s183 = sadd.s32 %s181, %s182
        %s184 = smul.addr %s183, 8
        %s185 = scalar_lea.vmem %s2, %s184
      $region28: #{tpu_custom_call.1} parent=15 // pred_fallthru
        _
    $region16: #{tpu_custom_call.1} parent=5 // pred_fallthru
      _
    %p186 = scmp.le.s32.totalorder 1, %s9
    %p187 = scmp.lt.s32.totalorder %s9, 5
    %p188 = pnand %p186, %p187
    %p189 = pneg %p188
    // Predicated region
    $region29: #{tpu_custom_call.1} parent=5 // pred_check
      _
    $region30: #{tpu_custom_call.1} parent=5 // pred_check_branch
      %191 = sbr.rel (%p188) target = $region32
    $region31: #{tpu_custom_call.1} parent=5 // pred_region
      %s192 = ssub.s32 %s9, 1
      %p193 = scmp.lt.s32.totalorder %s18, 1
      %s194 = scalar_select %p193, %s18, 1
      %p195 = scmp.lt.s32.totalorder %s19, 1
      %s196 = scalar_select %p195, %s19, 1
      %s197 = smul.addr %s196, 2
      %s198 = smul.addr %s194, 4
      %s199 = sadd.s32 %s197, %s198
      %s200 = smul.addr %s199, 8
      %s201 = scalar_lea.vmem %s0, %s200
      %p202 = pneg %p49
      %p203 = pneg %p46
      %p204 = scmp.lt.s32.totalorder %s18, 1
      %s205 = scalar_select %p204, %s18, 1
      %p206 = scmp.lt.s32.totalorder %s19, 1
      %s207 = scalar_select %p206, %s19, 1
      %s208 = smul.addr %s205, 2
      %s209 = sadd.s32 %s207, %s208
      %s210 = smul.addr %s209, 8
      %s211 = scalar_lea.vmem %s1, %s210
      %p212 = pneg %p77
      %p213 = pneg %p74
      %p214 = scmp.lt.s32.totalorder %s18, 1
      %s215 = scalar_select %p214, %s18, 1
      %p216 = scmp.lt.s32.totalorder %s19, 1
      %s217 = scalar_select %p216, %s19, 1
      %s218 = smul.addr %s215, 2
      %s219 = sadd.s32 %s217, %s218
      %s220 = smul.addr %s219, 8
      %s221 = scalar_lea.vmem %s2, %s220
      %p222 = pneg %p105
      %p223 = pneg %p102
      %p224 = pneg %p133
      %p225 = pneg %p130
      %p226 = scmp.lt.s32.totalorder %s18, 1
      %s227 = scalar_select %p226, %s18, 1
      %p228 = scmp.lt.s32.totalorder %s19, 1
      %s229 = scalar_select %p228, %s19, 1
      %s230 = smul.addr %s229, 2
      %s231 = smul.addr %s227, 4
      %s232 = sadd.s32 %s230, %s231
      %s233 = smul.addr %s232, 8
      %s234 = scalar_lea.vmem %s3, %s233
      %p235 = scmp.lt.s32.totalorder %s18, 1
      %s236 = scalar_select %p235, %s18, 1
      %p237 = scmp.lt.s32.totalorder %s19, 1
      %s238 = scalar_select %p237, %s19, 1
      %s239 = smul.addr %s238, 2
      %s240 = smul.addr %s236, 4
      %s241 = sadd.s32 %s239, %s240
      %s242 = smul.addr %s241, 8
      %s243 = scalar_lea.vmem %s0, %s242
      %p244 = scmp.lt.s32.totalorder %s18, 1
      %s245 = scalar_select %p244, %s18, 1
      %p246 = scmp.lt.s32.totalorder %s19, 1
      %s247 = scalar_select %p246, %s19, 1
      %s248 = smul.addr %s245, 2
      %s249 = sadd.s32 %s247, %s248
      %s250 = smul.addr %s249, 8
      %s251 = scalar_lea.vmem %s1, %s250
      %p252 = scmp.lt.s32.totalorder %s18, 1
      %s253 = scalar_select %p252, %s18, 1
      %p254 = scmp.lt.s32.totalorder %s19, 1
      %s255 = scalar_select %p254, %s19, 1
      %s256 = smul.addr %s253, 2
      %s257 = sadd.s32 %s255, %s256
      %s258 = smul.addr %s257, 8
      %s259 = scalar_lea.vmem %s2, %s258
      %p260 = scmp.lt.s32.totalorder %s18, 1
      %s261 = scalar_select %p260, %s18, 1
      %p262 = scmp.lt.s32.totalorder %s19, 1
      %s263 = scalar_select %p262, %s19, 1
      %s264 = smul.addr %s263, 2
      %s265 = smul.addr %s261, 4
      %s266 = sadd.s32 %s264, %s265
      %s267 = smul.addr %s266, 8
      %s268 = scalar_lea.vmem %s3, %s267
      %v269 = vld [vmem:[%s243] sm:$0xff]
      %v270 = vld [vmem:[%s243 + $0x8] sm:$0xff]
      %v271 = vld [vmem:[%s251] sm:$0xff]
      %v272 = vld [vmem:[%s259] sm:$0xff]
      %vm273 = vcmask 64512
      %v275 = vsel %vm273, %v269, 0
      %v278 = vsel %vm273, %v270, 0
      %v281 = vsel %vm273, %v271, 0
      %283 = vmatpush.xpose.msra.mxu0 0.0
      %284 = vmatpush.xpose.msra.mxu0 0.0
      %285 = vmatpush.xpose.msra.mxu0 0.0
      %286 = vmatpush.xpose.msra.mxu0 0.0
      %287 = vmatpush.xpose.msra.mxu0 0.0
      %288 = vmatpush.xpose.msra.mxu0 0.0
      %289 = vmatpush.xpose.msra.mxu0 0.0
      %290 = vmatpush.xpose.msra.mxu0 0.0
      %291 = vmatpush.xpose.msra.mxu0 0.0
      %292 = vmatpush.xpose.msra.mxu0 0.0
      %293 = vmatpush.xpose.msra.mxu0 0.0
      %294 = vmatpush.xpose.msra.mxu0 0.0
      %295 = vmatpush.xpose.msra.mxu0 0.0
      %296 = vmatpush.xpose.msra.mxu0 0.0
      %297 = vmatpush.xpose.msra.mxu0 0.0
      %298 = vmatpush.xpose.msra.mxu0 %v281
      %299 = vmatmul.f32.gmra.mxu0 %v275
      %v300 = vpop.f32.mrf.mxu0
      %v301 = vadd.f32 0.0, %v300
      %302 = vmatmul.f32.gmra.mxu0 %v278
      %v303 = vpop.f32.mrf.mxu0
      %v304 = vadd.f32 0.0, %v303
      %305 = vdwg.mxu0
      %v306 = vsel %vm273, %v301, -inf
      %307 = vmax.xlane.f32.xlu0 %v306
      %v308 = vpop.xlane.xlu0 %307
      %v309 = vsel %vm273, %v304, -inf
      %310 = vmax.xlane.f32.xlu0 %v309
      %v311 = vpop.xlane.xlu0 %310
      %v312 = vsub.f32 %v301, %v308
      %v313 = vsub.f32 %v304, %v311
      %v314 = vmul.f32 %v312, 1.442695
      %v315 = vpow.pop %v314
      %v316 = vmul.f32 %v313, 1.442695
      %v317 = vpow.pop %v316
      %v318 = vsel %vm273, %v315, 0.0
      %319 = vadd.xlane.f32.xlu0 %v318
      %v320 = vpop.xlane.xlu0 %319
      %v321 = vsel %vm273, %v317, 0.0
      %322 = vadd.xlane.f32.xlu0 %v321
      %v323 = vpop.xlane.xlu0 %322
      %v325 = vsel %vm273, %v315, 0
      %v328 = vsel %vm273, %v317, 0
      %330 = vmatpush.msra.mxu0 0.0
      %331 = vmatpush.msra.mxu0 0.0
      %332 = vmatpush.msra.mxu0 0.0
      %333 = vmatpush.msra.mxu0 0.0
      %334 = vmatpush.msra.mxu0 0.0
      %335 = vmatpush.msra.mxu0 0.0
      %336 = vmatpush.msra.mxu0 0.0
      %337 = vmatpush.msra.mxu0 0.0
      %338 = vmatpush.msra.mxu0 0.0
      %339 = vmatpush.msra.mxu0 0.0
      %340 = vmatpush.msra.mxu0 0.0
      %341 = vmatpush.msra.mxu0 0.0
      %342 = vmatpush.msra.mxu0 0.0
      %343 = vmatpush.msra.mxu0 0.0
      %344 = vmatpush.msra.mxu0 0.0
      %345 = vmatpush.msra.mxu0 %v272
      %346 = vmatmul.f32.gmra.mxu0 %v325
      %v347 = vpop.f32.mrf.mxu0
      %v348 = vadd.f32 0.0, %v347
      %349 = vmatmul.f32.gmra.mxu0 %v328
      %v350 = vpop.f32.mrf.mxu0
      %v351 = vadd.f32 0.0, %v350
      %352 = vdwg.mxu0
      %v353 = vrcp.pop %v320
      %v354 = vrcp.pop %v323
      %v355 = vmul.f32 %v348, %v353
      %v356 = vmul.f32 %v351, %v354
      %357 = vst.msk [vmem:[%s268] sm:$0xff] %vm273, %v355
      %358 = vst.msk [vmem:[%s268 + $0x8] sm:$0xff] %vm273, %v356
      %p359 = scmp.lt.s32.totalorder %s18, 1
      %s360 = scalar_select %p359, %s18, 1
      %p361 = scmp.lt.s32.totalorder %s19, 1
      %s362 = scalar_select %p361, %s19, 1
      %s363 = smul.addr %s362, 2
      %s364 = smul.addr %s360, 4
      %s365 = sadd.s32 %s363, %s364
      %s366 = smul.addr %s365, 8
      %s367 = scalar_lea.vmem %s3, %s366
      // Predicated region
      $region33: #{tpu_custom_call.1} parent=31 // pred_check
        %p368 = pneg %p130
      $region34: #{tpu_custom_call.1} parent=31 // pred_check_branch
        %370 = sbr.rel (%p368) target = $region36
      $region35: #{tpu_custom_call.1} parent=31 // pred_region
        _
      $region36: #{tpu_custom_call.1} parent=31 // pred_fallthru
        _
    $region32: #{tpu_custom_call.1} parent=5 // pred_fallthru
      _
    %p371 = scmp.le.s32.totalorder 2, %s9
    // Predicated region
    $region37: #{tpu_custom_call.1} parent=5 // pred_check
      %p372 = pneg %p371
    $region38: #{tpu_custom_call.1} parent=5 // pred_check_branch
      %374 = sbr.rel (%p372) target = $region40
    $region39: #{tpu_custom_call.1} parent=5 // pred_region
      %s375 = ssub.s32 %s9, 2
      // Predicated region
      $region41: #{tpu_custom_call.1} parent=39 // pred_check
        %p376 = pneg %p136
      $region42: #{tpu_custom_call.1} parent=39 // pred_check_branch
        %378 = sbr.rel (%p376) target = $region44
      $region43: #{tpu_custom_call.1} parent=39 // pred_region
        %p379 = scmp.lt.s32.totalorder %s20, 1
        %s380 = scalar_select %p379, %s20, 1
        %p381 = scmp.lt.s32.totalorder %s21, 1
        %s382 = scalar_select %p381, %s21, 1
        %s383 = smul.addr %s382, 2
        %s384 = smul.addr %s380, 4
        %s385 = sadd.s32 %s383, %s384
        %s386 = smul.addr %s385, 8
        %s387 = scalar_lea.vmem %s3, %s386
      $region44: #{tpu_custom_call.1} parent=39 // pred_fallthru
        _
    $region40: #{tpu_custom_call.1} parent=5 // pred_fallthru
      _
  $region6: #{tpu_custom_call.1} parent=0 // loop_footer
    %s13 = sadd.s32 1, %s9
  $region7: #{tpu_custom_call.1} parent=0 // loop_footer_branch
    %8 = sbr.rel target = $region3
  $region8: #{tpu_custom_call.1} parent=0 // loop_exit
    _

</llo_original>
